<compile_context>
chip_gen: v7x
topology: tpu7x:2x2x1
jax: 0.10.0
libtpu: 0.0.40
codegen_flags: <defaults>
</compile_context>

<pallas_src>
import jax
import jax.numpy as jnp
from jax.experimental import pallas as pl
from jax.experimental.pallas import tpu as pltpu

BN_EPS = 1e-5  # nn.BatchNorm1d default

# padded (lane-aligned) feature dims
PAD = {198: 256, 500: 512, 250: 256, 100: 128, 10: 128}
D0, D1, D2, D3, D4 = 256, 512, 256, 128, 128
ROWS = 8  # sublane padding of the single activation row


def climbnet_kernel(x_ref, w1_ref, w2_ref, w3_ref, w4_ref, b_ref, o_ref):
    # x_ref: (8, 256) f32        w*_ref: bf16 (BN folded in, zero padded)
    # b_ref: (8, 512) f32 packed biases, row i = bias of layer i+1 (zero padded)
    x = x_ref[...].astype(jnp.bfloat16)                                  # (8, 256)

    h = jnp.dot(x, w1_ref[...], preferred_element_type=jnp.float32)     # (8, 512)
    h = jnp.maximum(h + b_ref[0:1, 0:D1], 0.0)
    # TODO(synk): nn.Dropout(0.2) treated as identity (eval / inference mode).

    h = jnp.dot(h.astype(jnp.bfloat16), w2_ref[...],
                preferred_element_type=jnp.float32)                      # (8, 256)
    h = jnp.maximum(h + b_ref[1:2, 0:D2], 0.0)

    h = jnp.dot(h.astype(jnp.bfloat16), w3_ref[...],
                preferred_element_type=jnp.float32)                      # (8, 128)
    h = jnp.maximum(h + b_ref[2:3, 0:D3], 0.0)

    o_ref[...] = (jnp.dot(h.astype(jnp.bfloat16), w4_ref[...],
                          preferred_element_type=jnp.float32)
                  + b_ref[3:4, 0:D4])                                    # (8, 128)


def make_params(key):
    """Deterministic synthetic parameters matching ClimbNet's PyTorch shapes."""
    dims = [(198, 500), (500, 250), (250, 100), (100, 10)]
    params = []
    keys = jax.random.split(key, len(dims))
    for (fin, fout), k in zip(dims, keys):
        kw, kb, kg, kbe, km, kv = jax.random.split(k, 6)
        bound = 1.0 / jnp.sqrt(fin)
        layer = {
            "w": jax.random.uniform(kw, (fin, fout), jnp.float32, -bound, bound),
            "b": jax.random.uniform(kb, (1, fout), jnp.float32, -bound, bound),
        }
        if fout != 10:  # BN only after the first three linears
            layer["gamma"] = 1.0 + 0.1 * jax.random.normal(kg, (1, fout), jnp.float32)
            layer["beta"] = 0.1 * jax.random.normal(kbe, (1, fout), jnp.float32)
            layer["mean"] = 0.1 * jax.random.normal(km, (1, fout), jnp.float32)
            layer["var"] = jax.random.uniform(kv, (1, fout), jnp.float32, 0.5, 1.5)
        params.append(layer)
    return params


def fold_bn_and_pad(params):
    """One-time prep: fold eval-mode BN into the Linears, zero-pad to
    lane-aligned shapes, cast weights to bf16, pack biases into (8, 512)."""
    ws, bs = [], []
    for layer in params:
        w, b = layer["w"], layer["b"]
        if "gamma" in layer:
            s = layer["gamma"] * jax.lax.rsqrt(layer["var"] + BN_EPS)    # (1, fout)
            w = w * s
            b = (b - layer["mean"]) * s + layer["beta"]
        fin, fout = w.shape
        fin_p, fout_p = PAD[fin], PAD[fout]
        ws.append(jnp.pad(w, ((0, fin_p - fin), (0, fout_p - fout)))
                  .astype(jnp.bfloat16))
        bs.append(jnp.pad(b, ((0, 0), (0, fout_p - fout)))[0])           # (fout_p,)
    bias_pack = jnp.zeros((ROWS, D1), jnp.float32)
    for i, b in enumerate(bs):
        bias_pack = bias_pack.at[i, : b.shape[0]].set(b)
    return tuple(ws) + (bias_pack,)


@jax.jit
def climbnet_forward(x, w1, w2, w3, w4, bias_pack):
    # single feature vector -> (8, 256) lane/sublane-aligned slab (extra rows
    # and lanes are zero and are discarded after the kernel).
    x_pad = jnp.zeros((ROWS, D0), jnp.float32).at[0, :198].set(x.astype(jnp.float32))

    vmem = pl.BlockSpec(memory_space=pltpu.MemorySpace.VMEM)
    out = pl.pallas_call(
        climbnet_kernel,
        out_shape=jax.ShapeDtypeStruct((ROWS, D4), jnp.float32),
        in_specs=[vmem] * 6,
        out_specs=vmem,
    )(x_pad, w1, w2, w3, w4, bias_pack)
    return out[0:1, 0:10]  # (1, 10), same shape as the PyTorch module's output


def reference_forward_f32(x, params):
    """Original ClimbNet math in f32 (eval-mode BN, dropout = identity)."""
    h = x.reshape(1, 198)
    for layer in params[:3]:
        h = h @ layer["w"] + layer["b"]
        h = (h - layer["mean"]) * jax.lax.rsqrt(layer["var"] + BN_EPS)
        h = h * layer["gamma"] + layer["beta"]
        h = jnp.maximum(h, 0.0)
    return h @ params[3]["w"] + params[3]["b"]


def reference_forward_bf16(x, prepared):
    """Pure-JAX replica of the exact kernel math (folded BN, bf16 weights,
    f32 accumulation) for a tight numerical check."""
    w1, w2, w3, w4, bias_pack = prepared
    xp = jnp.zeros((ROWS, D0), jnp.float32).at[0, :198].set(x)
    h = jnp.dot(xp.astype(jnp.bfloat16), w1, preferred_element_type=jnp.float32)
    h = jnp.maximum(h + bias_pack[0:1, 0:D1], 0.0)
    h = jnp.dot(h.astype(jnp.bfloat16), w2, preferred_element_type=jnp.float32)
    h = jnp.maximum(h + bias_pack[1:2, 0:D2], 0.0)
    h = jnp.dot(h.astype(jnp.bfloat16), w3, preferred_element_type=jnp.float32)
    h = jnp.maximum(h + bias_pack[2:3, 0:D3], 0.0)
    h = jnp.dot(h.astype(jnp.bfloat16), w4, preferred_element_type=jnp.float32)
    h = h + bias_pack[3:4, 0:D4]
    return h[0:1, 0:10]


if __name__ == "__main__":
    key = jax.random.PRNGKey(0)
    kx, kp = jax.random.split(key)
    x = jax.random.normal(kx, (198,), jnp.float32)  # single feature vector
    params = make_params(kp)

    prepared = fold_bn_and_pad(params)  # one-time parameter prep (BN fold + pad + bf16)

    out = climbnet_forward(x, *prepared)
    jax.block_until_ready(out)
    assert out.shape == (1, 10), out.shape

    # Tight check: kernel vs. identical folded/bf16/f32-accum math in plain JAX.
    ref_bf16 = reference_forward_bf16(x, prepared)
    assert jnp.allclose(out, ref_bf16, atol=1e-4, rtol=1e-4), (out, ref_bf16)

    # Semantics check vs. the original f32 eval-mode BN math (loose tolerance
    # accounts for bf16 weight quantization).
    ref_f32 = reference_forward_f32(x, params)
    assert jnp.allclose(out, ref_f32, atol=5e-2, rtol=5e-2), (out, ref_f32)

    print("KERNEL_OK")
</pallas_src>

<mosaic_0001>
module attributes {stable_mosaic.version = 11 : i64} {
  func.func @climbnet_kernel(%arg0: memref<8x256xf32, #tpu.memory_space<vmem>>, %arg1: memref<256x512xbf16, #tpu.memory_space<vmem>>, %arg2: memref<512x256xbf16, #tpu.memory_space<vmem>>, %arg3: memref<256x128xbf16, #tpu.memory_space<vmem>>, %arg4: memref<128x128xbf16, #tpu.memory_space<vmem>>, %arg5: memref<8x512xf32, #tpu.memory_space<vmem>>, %arg6: memref<8x128xf32, #tpu.memory_space<vmem>>) attributes {dimension_semantics = [], scalar_prefetch = 0 : i64, scratch_operands = 0 : i64, tpu.core_type = #tpu.core_type<tc>} {
    %c0 = arith.constant 0 : index
    %c0_0 = arith.constant 0 : index
    %0 = vector.load %arg0[%c0, %c0_0] : memref<8x256xf32, #tpu.memory_space<vmem>>, vector<8x256xf32>
    %1 = arith.truncf %0 : vector<8x256xf32> to vector<8x256xbf16>
    %c0_1 = arith.constant 0 : index
    %c0_2 = arith.constant 0 : index
    %2 = vector.load %arg1[%c0_1, %c0_2] : memref<256x512xbf16, #tpu.memory_space<vmem>>, vector<256x512xbf16>
    %cst = arith.constant dense<0.000000e+00> : vector<8x512xf32>
    %3 = tpu.matmul %1, %2, %cst {dimension_numbers = #tpu.dot_dimension_numbers<[1], [0], [0], [1], [0, 0, 1, 1], [], []>} : vector<8x256xbf16>, vector<256x512xbf16>, vector<8x512xf32> -> vector<8x512xf32>
    %c0_3 = arith.constant 0 : index
    %c0_4 = arith.constant 0 : index
    %4 = vector.load %arg5[%c0_3, %c0_4] : memref<8x512xf32, #tpu.memory_space<vmem>>, vector<1x512xf32>
    %5 = vector.broadcast %4 : vector<1x512xf32> to vector<8x512xf32>
    %6 = arith.addf %3, %5 : vector<8x512xf32>
    %cst_5 = arith.constant 0.000000e+00 : f32
    %7 = vector.broadcast %cst_5 : f32 to vector<8x512xf32>
    %8 = arith.maximumf %6, %7 : vector<8x512xf32>
    %9 = arith.truncf %8 : vector<8x512xf32> to vector<8x512xbf16>
    %c0_6 = arith.constant 0 : index
    %c0_7 = arith.constant 0 : index
    %10 = vector.load %arg2[%c0_6, %c0_7] : memref<512x256xbf16, #tpu.memory_space<vmem>>, vector<512x256xbf16>
    %cst_8 = arith.constant dense<0.000000e+00> : vector<8x256xf32>
    %11 = tpu.matmul %9, %10, %cst_8 {dimension_numbers = #tpu.dot_dimension_numbers<[1], [0], [0], [1], [0, 0, 1, 1], [], []>} : vector<8x512xbf16>, vector<512x256xbf16>, vector<8x256xf32> -> vector<8x256xf32>
    %c1 = arith.constant 1 : index
    %c0_9 = arith.constant 0 : index
    %12 = vector.load %arg5[%c1, %c0_9] : memref<8x512xf32, #tpu.memory_space<vmem>>, vector<1x256xf32>
    %13 = vector.broadcast %12 : vector<1x256xf32> to vector<8x256xf32>
    %14 = arith.addf %11, %13 : vector<8x256xf32>
    %cst_10 = arith.constant 0.000000e+00 : f32
    %15 = vector.broadcast %cst_10 : f32 to vector<8x256xf32>
    %16 = arith.maximumf %14, %15 : vector<8x256xf32>
    %17 = arith.truncf %16 : vector<8x256xf32> to vector<8x256xbf16>
    %c0_11 = arith.constant 0 : index
    %c0_12 = arith.constant 0 : index
    %18 = vector.load %arg3[%c0_11, %c0_12] : memref<256x128xbf16, #tpu.memory_space<vmem>>, vector<256x128xbf16>
    %cst_13 = arith.constant dense<0.000000e+00> : vector<8x128xf32>
    %19 = tpu.matmul %17, %18, %cst_13 {dimension_numbers = #tpu.dot_dimension_numbers<[1], [0], [0], [1], [0, 0, 1, 1], [], []>} : vector<8x256xbf16>, vector<256x128xbf16>, vector<8x128xf32> -> vector<8x128xf32>
    %c2 = arith.constant 2 : index
    %c0_14 = arith.constant 0 : index
    %20 = vector.load %arg5[%c2, %c0_14] : memref<8x512xf32, #tpu.memory_space<vmem>>, vector<1x128xf32>
    %21 = vector.broadcast %20 : vector<1x128xf32> to vector<8x128xf32>
    %22 = arith.addf %19, %21 : vector<8x128xf32>
    %cst_15 = arith.constant 0.000000e+00 : f32
    %23 = vector.broadcast %cst_15 : f32 to vector<8x128xf32>
    %24 = arith.maximumf %22, %23 : vector<8x128xf32>
    %25 = arith.truncf %24 : vector<8x128xf32> to vector<8x128xbf16>
    %c0_16 = arith.constant 0 : index
    %c0_17 = arith.constant 0 : index
    %26 = vector.load %arg4[%c0_16, %c0_17] : memref<128x128xbf16, #tpu.memory_space<vmem>>, vector<128x128xbf16>
    %cst_18 = arith.constant dense<0.000000e+00> : vector<8x128xf32>
    %27 = tpu.matmul %25, %26, %cst_18 {dimension_numbers = #tpu.dot_dimension_numbers<[1], [0], [0], [1], [0, 0, 1, 1], [], []>} : vector<8x128xbf16>, vector<128x128xbf16>, vector<8x128xf32> -> vector<8x128xf32>
    %c3 = arith.constant 3 : index
    %c0_19 = arith.constant 0 : index
    %28 = vector.load %arg5[%c3, %c0_19] : memref<8x512xf32, #tpu.memory_space<vmem>>, vector<1x128xf32>
    %29 = vector.broadcast %28 : vector<1x128xf32> to vector<8x128xf32>
    %30 = arith.addf %27, %29 : vector<8x128xf32>
    %c0_20 = arith.constant 0 : index
    %c0_21 = arith.constant 0 : index
    %31 = vector.load %arg6[%c0_20, %c0_21] : memref<8x128xf32, #tpu.memory_space<vmem>>, vector<8x128xf32>
    tpu.vector_store %arg6[%c0_20, %c0_21], %30 {strides = array<i32>} : memref<8x128xf32, #tpu.memory_space<vmem>>, vector<8x128xf32>,
    return
  }
}

</mosaic_0001>

<llo_original>
// kernel: climbnet_forward.1
$region0: #{climbnet_forward.1}
  #allocation0 [shape = 'u32[]', space=smem, size = 0x4, offset = 0x4, fixed_abs, tag = 'smem constant byte address 0x4 - core index']
  #allocation1 [shape = 'u32[144,128]{1,0:T(1,128)}', space=vmem, size = 0x12000, scoped, tag = 'internal scratch']
  %s0 = inlined_call_operand.vmem [shape: f32[8,256], index: 0, kind: input, shape index: {}]
  %s1 = inlined_call_operand.hbm [shape: bf16[256,512], index: 1, kind: input, shape index: {}]
  %s2 = inlined_call_operand.hbm [shape: bf16[512,256], index: 2, kind: input, shape index: {}]
  %s3 = inlined_call_operand.hbm [shape: bf16[256,128], index: 3, kind: input, shape index: {}]
  %s4 = inlined_call_operand.hbm [shape: bf16[128,128], index: 4, kind: input, shape index: {}]
  %s5 = inlined_call_operand.vmem [shape: f32[8,512], index: 5, kind: input, shape index: {}]
  %s6 = inlined_call_operand.vmem [shape: f32[8,128], index: 6, kind: output, shape index: {}]
  %s7 = sld [smem:[#allocation0]]
  $region50: #{climbnet_forward.1} parent=0
    _
  %s9 = ssub.s32 1, %s7
  %s10 = scalar_select 0, %s9, %s7
  $region1: #{climbnet_forward.1} parent=0
    #allocation2 [shape = 'u8[262144]{0}', space=vmem, size = 0x40000, scoped, tag = 'input window, operand 1, single buffered']
    #allocation3 [shape = 's32[1]{0}', space=sflag, size = 0x4, scoped, tag = 'scoped memory for climbnet_forward.1']
    #allocation4 [shape = 'u8[262144]{0}', space=vmem, size = 0x40000, scoped, tag = 'input window, operand 2, single buffered']
    #allocation5 [shape = 's32[1]{0}', space=sflag, size = 0x4, scoped, tag = 'scoped memory for climbnet_forward.1']
    #allocation6 [shape = 'u8[65536]{0}', space=vmem, size = 0x10000, scoped, tag = 'input window, operand 3, single buffered']
    #allocation7 [shape = 'u8[32768]{0}', space=vmem, size = 0x8000, scoped, tag = 'input window, operand 4, single buffered']
    #allocation8 [shape = 's32[1]{0}', space=sflag, size = 0x4, scoped, tag = 'scoped memory for climbnet_forward.1']
    %11 = vsyncpa [#allocation3], 0
    %12 = vsyncpa [#allocation5], 0
    %13 = vsyncpa [#allocation8], 0
    // Predicated region
    $region2: #{climbnet_forward.1} parent=1 // pred_check
      _
    $region3: #{climbnet_forward.1} parent=1 // pred_check_branch
      %15 = sbr.rel (0) target = $region5
    $region4: #{climbnet_forward.1} parent=1 // pred_region
      _
    $region5: #{climbnet_forward.1} parent=1 // pred_fallthru
      _
    // Predicated region
    $region6: #{climbnet_forward.1} parent=1 // pred_check
      _
    $region7: #{climbnet_forward.1} parent=1 // pred_check_branch
      %17 = sbr.rel (0) target = $region9
    $region8: #{climbnet_forward.1} parent=1 // pred_region
      %s19 = ssub.s32 8192, 8192
      %20 = vsyncadd [#allocation3], %s19
      %s21 = sshll.u32 [#allocation2], 4
      %s22 = int_to_ptr.vmem [resolvable:$true] %s21
      %27 = dma.hbm_to_vmem [thread:$0]  %s1, 8192, %s22, [#allocation3], 256, 256, 16
    $region9: #{climbnet_forward.1} parent=1 // pred_fallthru
      _
    // Predicated region
    $region10: #{climbnet_forward.1} parent=1 // pred_check
      _
    $region11: #{climbnet_forward.1} parent=1 // pred_check_branch
      %29 = sbr.rel (0) target = $region13
    $region12: #{climbnet_forward.1} parent=1 // pred_region
      %s31 = ssub.s32 8192, 8192
      %32 = vsyncadd [#allocation5], %s31
      %s33 = sshll.u32 [#allocation4], 4
      %s34 = int_to_ptr.vmem [resolvable:$true] %s33
      %39 = dma.hbm_to_vmem [thread:$0]  %s2, 8192, %s34, [#allocation5], 128, 128, 8
    $region13: #{climbnet_forward.1} parent=1 // pred_fallthru
      _
    // Predicated region
    $region14: #{climbnet_forward.1} parent=1 // pred_check
      _
    $region15: #{climbnet_forward.1} parent=1 // pred_check_branch
      %41 = sbr.rel (0) target = $region17
    $region16: #{climbnet_forward.1} parent=1 // pred_region
      %s43 = ssub.s32 2048, 2048
      %44 = vsyncadd [#allocation5], %s43
      %s45 = sshll.u32 [#allocation6], 4
      %s46 = int_to_ptr.vmem [resolvable:$true] %s45
      %51 = dma.hbm_to_vmem [thread:$0]  %s3, 2048, %s46, [#allocation5], 64, 64, 4
    $region17: #{climbnet_forward.1} parent=1 // pred_fallthru
      _
    // Predicated region
    $region18: #{climbnet_forward.1} parent=1 // pred_check
      _
    $region19: #{climbnet_forward.1} parent=1 // pred_check_branch
      %53 = sbr.rel (0) target = $region21
    $region20: #{climbnet_forward.1} parent=1 // pred_region
      %s55 = ssub.s32 1024, 1024
      %56 = vsyncadd [#allocation8], %s55
      %s57 = sshll.u32 [#allocation7], 4
      %s58 = int_to_ptr.vmem [resolvable:$true] %s57
      %63 = dma.hbm_to_vmem [thread:$0]  %s4, 1024, %s58, [#allocation8], 64, 64, 4
    $region21: #{climbnet_forward.1} parent=1 // pred_fallthru
      _
    // Predicated region
    $region22: #{climbnet_forward.1} parent=1 // pred_check
      _
    $region23: #{climbnet_forward.1} parent=1 // pred_check_branch
      %65 = sbr.rel (0) target = $region25
    $region24: #{climbnet_forward.1} parent=1 // pred_region
      _
    $region25: #{climbnet_forward.1} parent=1 // pred_fallthru
      _
    // Predicated region
    $region26: #{climbnet_forward.1} parent=1 // pred_check
      _
    $region27: #{climbnet_forward.1} parent=1 // pred_check_branch
      %67 = sbr.rel (0) target = $region29
    $region28: #{climbnet_forward.1} parent=1 // pred_region
      %68 = dma.done [#allocation3], 8192
    $region29: #{climbnet_forward.1} parent=1 // pred_fallthru
      _
    // Predicated region
    $region30: #{climbnet_forward.1} parent=1 // pred_check
      _
    $region31: #{climbnet_forward.1} parent=1 // pred_check_branch
      %70 = sbr.rel (0) target = $region33
    $region32: #{climbnet_forward.1} parent=1 // pred_region
      %71 = dma.done [#allocation5], 8192
    $region33: #{climbnet_forward.1} parent=1 // pred_fallthru
      _
    // Predicated region
    $region34: #{climbnet_forward.1} parent=1 // pred_check
      _
    $region35: #{climbnet_forward.1} parent=1 // pred_check_branch
      %73 = sbr.rel (0) target = $region37
    $region36: #{climbnet_forward.1} parent=1 // pred_region
      %74 = dma.done [#allocation5], 2048
    $region37: #{climbnet_forward.1} parent=1 // pred_fallthru
      _
    // Predicated region
    $region38: #{climbnet_forward.1} parent=1 // pred_check
      _
    $region39: #{climbnet_forward.1} parent=1 // pred_check_branch
      %76 = sbr.rel (0) target = $region41
    $region40: #{climbnet_forward.1} parent=1 // pred_region
      %77 = dma.done [#allocation8], 1024
    $region41: #{climbnet_forward.1} parent=1 // pred_fallthru
      _
    %v79 = vld [vmem:[%s0] sm:$0xff]
    %v80 = vld [vmem:[%s0 + $0x8] sm:$0xff]
    %v81 = vpack.c.bf16 %v79, %v79
    %v82 = vpack.c.bf16 %v80, %v80
    %v83 = vld [vmem:[#allocation2] sm:$0xff]
    %v84 = vld [vmem:[#allocation2 + $0x8] sm:$0xff]
    %v85 = vld [vmem:[#allocation2 + $0x10] sm:$0xff]
    %v86 = vld [vmem:[#allocation2 + $0x18] sm:$0xff]
    %v87 = vld [vmem:[#allocation2 + $0x20] sm:$0xff]
    %v88 = vld [vmem:[#allocation2 + $0x28] sm:$0xff]
    %v89 = vld [vmem:[#allocation2 + $0x30] sm:$0xff]
    %v90 = vld [vmem:[#allocation2 + $0x38] sm:$0xff]
    %v91 = vld [vmem:[#allocation2 + $0x40] sm:$0xff]
    %v92 = vld [vmem:[#allocation2 + $0x48] sm:$0xff]
    %v93 = vld [vmem:[#allocation2 + $0x50] sm:$0xff]
    %v94 = vld [vmem:[#allocation2 + $0x58] sm:$0xff]
    %v95 = vld [vmem:[#allocation2 + $0x60] sm:$0xff]
    %v96 = vld [vmem:[#allocation2 + $0x68] sm:$0xff]
    %v97 = vld [vmem:[#allocation2 + $0x70] sm:$0xff]
    %v98 = vld [vmem:[#allocation2 + $0x78] sm:$0xff]
    %v99 = vld [vmem:[#allocation2 + $0x80] sm:$0xff]
    %v100 = vld [vmem:[#allocation2 + $0x88] sm:$0xff]
    %v101 = vld [vmem:[#allocation2 + $0x90] sm:$0xff]
    %v102 = vld [vmem:[#allocation2 + $0x98] sm:$0xff]
    %v103 = vld [vmem:[#allocation2 + $0xa0] sm:$0xff]
    %v104 = vld [vmem:[#allocation2 + $0xa8] sm:$0xff]
    %v105 = vld [vmem:[#allocation2 + $0xb0] sm:$0xff]
    %v106 = vld [vmem:[#allocation2 + $0xb8] sm:$0xff]
    %v107 = vld [vmem:[#allocation2 + $0xc0] sm:$0xff]
    %v108 = vld [vmem:[#allocation2 + $0xc8] sm:$0xff]
    %v109 = vld [vmem:[#allocation2 + $0xd0] sm:$0xff]
    %v110 = vld [vmem:[#allocation2 + $0xd8] sm:$0xff]
    %v111 = vld [vmem:[#allocation2 + $0xe0] sm:$0xff]
    %v112 = vld [vmem:[#allocation2 + $0xe8] sm:$0xff]
    %v113 = vld [vmem:[#allocation2 + $0xf0] sm:$0xff]
    %v114 = vld [vmem:[#allocation2 + $0xf8] sm:$0xff]
    %v115 = vld [vmem:[#allocation2 + $0x100] sm:$0xff]
    %v116 = vld [vmem:[#allocation2 + $0x108] sm:$0xff]
    %v117 = vld [vmem:[#allocation2 + $0x110] sm:$0xff]
    %v118 = vld [vmem:[#allocation2 + $0x118] sm:$0xff]
    %v119 = vld [vmem:[#allocation2 + $0x120] sm:$0xff]
    %v120 = vld [vmem:[#allocation2 + $0x128] sm:$0xff]
    %v121 = vld [vmem:[#allocation2 + $0x130] sm:$0xff]
    %v122 = vld [vmem:[#allocation2 + $0x138] sm:$0xff]
    %v123 = vld [vmem:[#allocation2 + $0x140] sm:$0xff]
    %v124 = vld [vmem:[#allocation2 + $0x148] sm:$0xff]
    %v125 = vld [vmem:[#allocation2 + $0x150] sm:$0xff]
    %v126 = vld [vmem:[#allocation2 + $0x158] sm:$0xff]
    %v127 = vld [vmem:[#allocation2 + $0x160] sm:$0xff]
    %v128 = vld [vmem:[#allocation2 + $0x168] sm:$0xff]
    %v129 = vld [vmem:[#allocation2 + $0x170] sm:$0xff]
    %v130 = vld [vmem:[#allocation2 + $0x178] sm:$0xff]
    %v131 = vld [vmem:[#allocation2 + $0x180] sm:$0xff]
    %v132 = vld [vmem:[#allocation2 + $0x188] sm:$0xff]
    %v133 = vld [vmem:[#allocation2 + $0x190] sm:$0xff]
    %v134 = vld [vmem:[#allocation2 + $0x198] sm:$0xff]
    %v135 = vld [vmem:[#allocation2 + $0x1a0] sm:$0xff]
    %v136 = vld [vmem:[#allocation2 + $0x1a8] sm:$0xff]
    %v137 = vld [vmem:[#allocation2 + $0x1b0] sm:$0xff]
    %v138 = vld [vmem:[#allocation2 + $0x1b8] sm:$0xff]
    %v139 = vld [vmem:[#allocation2 + $0x1c0] sm:$0xff]
    %v140 = vld [vmem:[#allocation2 + $0x1c8] sm:$0xff]
    %v141 = vld [vmem:[#allocation2 + $0x1d0] sm:$0xff]
    %v142 = vld [vmem:[#allocation2 + $0x1d8] sm:$0xff]
    %v143 = vld [vmem:[#allocation2 + $0x1e0] sm:$0xff]
    %v144 = vld [vmem:[#allocation2 + $0x1e8] sm:$0xff]
    %v145 = vld [vmem:[#allocation2 + $0x1f0] sm:$0xff]
    %v146 = vld [vmem:[#allocation2 + $0x1f8] sm:$0xff]
    %v147 = vld [vmem:[%s5] ss:$8 sm:$0xf]
    %v149 = vlaneseq
    %v150 = vshrl.u32 %v149, 7
    %v151 = vsub.s32 0, %v150
    %v152 = vrot.slane %v147, %v151
    %v153 = vlaneseq
    %v154 = vshrl.u32 %v153, 7
    %v155 = vsub.s32 1, %v154
    %v156 = vrot.slane %v147, %v155
    %v157 = vlaneseq
    %v158 = vshrl.u32 %v157, 7
    %v159 = vsub.s32 2, %v158
    %v160 = vrot.slane %v147, %v159
    %v161 = vlaneseq
    %v162 = vshrl.u32 %v161, 7
    %v163 = vsub.s32 3, %v162
    %v164 = vrot.slane %v147, %v163
    %v233 = vunpack.c.l.b16 %v83
    %v234 = vunpack.c.h.b16 %v83
    %v235 = vunpack.c.l.b16 %v84
    %v236 = vunpack.c.h.b16 %v84
    %v237 = vunpack.c.l.b16 %v85
    %v238 = vunpack.c.h.b16 %v85
    %v239 = vunpack.c.l.b16 %v86
    %v240 = vunpack.c.h.b16 %v86
    %v241 = vunpack.c.l.b16 %v87
    %v242 = vunpack.c.h.b16 %v87
    %v243 = vunpack.c.l.b16 %v88
    %v244 = vunpack.c.h.b16 %v88
    %v245 = vunpack.c.l.b16 %v89
    %v246 = vunpack.c.h.b16 %v89
    %v247 = vunpack.c.l.b16 %v90
    %v248 = vunpack.c.h.b16 %v90
    %v249 = vunpack.c.l.b16 %v91
    %v250 = vunpack.c.h.b16 %v91
    %v251 = vunpack.c.l.b16 %v92
    %v252 = vunpack.c.h.b16 %v92
    %v253 = vunpack.c.l.b16 %v93
    %v254 = vunpack.c.h.b16 %v93
    %v255 = vunpack.c.l.b16 %v94
    %v256 = vunpack.c.h.b16 %v94
    %v257 = vunpack.c.l.b16 %v95
    %v258 = vunpack.c.h.b16 %v95
    %v259 = vunpack.c.l.b16 %v96
    %v260 = vunpack.c.h.b16 %v96
    %v261 = vunpack.c.l.b16 %v97
    %v262 = vunpack.c.h.b16 %v97
    %v263 = vunpack.c.l.b16 %v98
    %v264 = vunpack.c.h.b16 %v98
    %v265 = vunpack.c.l.b16 %v99
    %v266 = vunpack.c.h.b16 %v99
    %v267 = vunpack.c.l.b16 %v100
    %v268 = vunpack.c.h.b16 %v100
    %v269 = vunpack.c.l.b16 %v101
    %v270 = vunpack.c.h.b16 %v101
    %v271 = vunpack.c.l.b16 %v102
    %v272 = vunpack.c.h.b16 %v102
    %v273 = vunpack.c.l.b16 %v103
    %v274 = vunpack.c.h.b16 %v103
    %v275 = vunpack.c.l.b16 %v104
    %v276 = vunpack.c.h.b16 %v104
    %v277 = vunpack.c.l.b16 %v105
    %v278 = vunpack.c.h.b16 %v105
    %v279 = vunpack.c.l.b16 %v106
    %v280 = vunpack.c.h.b16 %v106
    %v281 = vunpack.c.l.b16 %v107
    %v282 = vunpack.c.h.b16 %v107
    %v283 = vunpack.c.l.b16 %v108
    %v284 = vunpack.c.h.b16 %v108
    %v285 = vunpack.c.l.b16 %v109
    %v286 = vunpack.c.h.b16 %v109
    %v287 = vunpack.c.l.b16 %v110
    %v288 = vunpack.c.h.b16 %v110
    %v289 = vunpack.c.l.b16 %v111
    %v290 = vunpack.c.h.b16 %v111
    %v291 = vunpack.c.l.b16 %v112
    %v292 = vunpack.c.h.b16 %v112
    %v293 = vunpack.c.l.b16 %v113
    %v294 = vunpack.c.h.b16 %v113
    %v295 = vunpack.c.l.b16 %v114
    %v296 = vunpack.c.h.b16 %v114
    %v297 = vunpack.c.l.b16 %v115
    %v298 = vunpack.c.h.b16 %v115
    %v299 = vunpack.c.l.b16 %v116
    %v300 = vunpack.c.h.b16 %v116
    %v301 = vunpack.c.l.b16 %v117
    %v302 = vunpack.c.h.b16 %v117
    %v303 = vunpack.c.l.b16 %v118
    %v304 = vunpack.c.h.b16 %v118
    %v305 = vunpack.c.l.b16 %v119
    %v306 = vunpack.c.h.b16 %v119
    %v307 = vunpack.c.l.b16 %v120
    %v308 = vunpack.c.h.b16 %v120
    %v309 = vunpack.c.l.b16 %v121
    %v310 = vunpack.c.h.b16 %v121
    %v311 = vunpack.c.l.b16 %v122
    %v312 = vunpack.c.h.b16 %v122
    %v313 = vunpack.c.l.b16 %v123
    %v314 = vunpack.c.h.b16 %v123
    %v315 = vunpack.c.l.b16 %v124
    %v316 = vunpack.c.h.b16 %v124
    %v317 = vunpack.c.l.b16 %v125
    %v318 = vunpack.c.h.b16 %v125
    %v319 = vunpack.c.l.b16 %v126
    %v320 = vunpack.c.h.b16 %v126
    %v321 = vunpack.c.l.b16 %v127
    %v322 = vunpack.c.h.b16 %v127
    %v323 = vunpack.c.l.b16 %v128
    %v324 = vunpack.c.h.b16 %v128
    %v325 = vunpack.c.l.b16 %v129
    %v326 = vunpack.c.h.b16 %v129
    %v327 = vunpack.c.l.b16 %v130
    %v328 = vunpack.c.h.b16 %v130
    %v329 = vunpack.c.l.b16 %v131
    %v330 = vunpack.c.h.b16 %v131
    %v331 = vunpack.c.l.b16 %v132
    %v332 = vunpack.c.h.b16 %v132
    %v333 = vunpack.c.l.b16 %v133
    %v334 = vunpack.c.h.b16 %v133
    %v335 = vunpack.c.l.b16 %v134
    %v336 = vunpack.c.h.b16 %v134
    %v337 = vunpack.c.l.b16 %v135
    %v338 = vunpack.c.h.b16 %v135
    %v339 = vunpack.c.l.b16 %v136
    %v340 = vunpack.c.h.b16 %v136
    %v341 = vunpack.c.l.b16 %v137
    %v342 = vunpack.c.h.b16 %v137
    %v343 = vunpack.c.l.b16 %v138
    %v344 = vunpack.c.h.b16 %v138
    %v345 = vunpack.c.l.b16 %v139
    %v346 = vunpack.c.h.b16 %v139
    %v347 = vunpack.c.l.b16 %v140
    %v348 = vunpack.c.h.b16 %v140
    %v349 = vunpack.c.l.b16 %v141
    %v350 = vunpack.c.h.b16 %v141
    %v351 = vunpack.c.l.b16 %v142
    %v352 = vunpack.c.h.b16 %v142
    %v353 = vunpack.c.l.b16 %v143
    %v354 = vunpack.c.h.b16 %v143
    %v355 = vunpack.c.l.b16 %v144
    %v356 = vunpack.c.h.b16 %v144
    %v357 = vunpack.c.l.b16 %v145
    %v358 = vunpack.c.h.b16 %v145
    %v359 = vunpack.c.l.b16 %v146
    %v360 = vunpack.c.h.b16 %v146
    %v361 = vpack.c.b16 %v237, %v233
    %v362 = vpack.c.b16 %v238, %v234
    %v363 = vpack.c.b16 %v239, %v235
    %v364 = vpack.c.b16 %v240, %v236
    %v365 = vpack.c.b16 %v245, %v241
    %v366 = vpack.c.b16 %v246, %v242
    %v367 = vpack.c.b16 %v247, %v243
    %v368 = vpack.c.b16 %v248, %v244
    %v369 = vpack.c.b16 %v253, %v249
    %v370 = vpack.c.b16 %v254, %v250
    %v371 = vpack.c.b16 %v255, %v251
    %v372 = vpack.c.b16 %v256, %v252
    %v373 = vpack.c.b16 %v261, %v257
    %v374 = vpack.c.b16 %v262, %v258
    %v375 = vpack.c.b16 %v263, %v259
    %v376 = vpack.c.b16 %v264, %v260
    %v377 = vpack.c.b16 %v269, %v265
    %v378 = vpack.c.b16 %v270, %v266
    %v379 = vpack.c.b16 %v271, %v267
    %v380 = vpack.c.b16 %v272, %v268
    %v381 = vpack.c.b16 %v277, %v273
    %v382 = vpack.c.b16 %v278, %v274
    %v383 = vpack.c.b16 %v279, %v275
    %v384 = vpack.c.b16 %v280, %v276
    %v385 = vpack.c.b16 %v285, %v281
    %v386 = vpack.c.b16 %v286, %v282
    %v387 = vpack.c.b16 %v287, %v283
    %v388 = vpack.c.b16 %v288, %v284
    %v389 = vpack.c.b16 %v293, %v289
    %v390 = vpack.c.b16 %v294, %v290
    %v391 = vpack.c.b16 %v295, %v291
    %v392 = vpack.c.b16 %v296, %v292
    %v393 = vpack.c.b16 %v301, %v297
    %v394 = vpack.c.b16 %v302, %v298
    %v395 = vpack.c.b16 %v303, %v299
    %v396 = vpack.c.b16 %v304, %v300
    %v397 = vpack.c.b16 %v309, %v305
    %v398 = vpack.c.b16 %v310, %v306
    %v399 = vpack.c.b16 %v311, %v307
    %v400 = vpack.c.b16 %v312, %v308
    %v401 = vpack.c.b16 %v317, %v313
    %v402 = vpack.c.b16 %v318, %v314
    %v403 = vpack.c.b16 %v319, %v315
    %v404 = vpack.c.b16 %v320, %v316
    %v405 = vpack.c.b16 %v325, %v321
    %v406 = vpack.c.b16 %v326, %v322
    %v407 = vpack.c.b16 %v327, %v323
    %v408 = vpack.c.b16 %v328, %v324
    %v409 = vpack.c.b16 %v333, %v329
    %v410 = vpack.c.b16 %v334, %v330
    %v411 = vpack.c.b16 %v335, %v331
    %v412 = vpack.c.b16 %v336, %v332
    %v413 = vpack.c.b16 %v341, %v337
    %v414 = vpack.c.b16 %v342, %v338
    %v415 = vpack.c.b16 %v343, %v339
    %v416 = vpack.c.b16 %v344, %v340
    %v417 = vpack.c.b16 %v349, %v345
    %v418 = vpack.c.b16 %v350, %v346
    %v419 = vpack.c.b16 %v351, %v347
    %v420 = vpack.c.b16 %v352, %v348
    %v421 = vpack.c.b16 %v357, %v353
    %v422 = vpack.c.b16 %v358, %v354
    %v423 = vpack.c.b16 %v359, %v355
    %v424 = vpack.c.b16 %v360, %v356
    %489 = vmatprep.subr.bf16.mxu0 %v362
    %490 = vmatpush1.bf16.msra.mxu0 %v361
    %491 = vmatprep.subr.bf16.mxu0 %v366
    %492 = vmatpush1.bf16.msra.mxu0 %v365
    %493 = vmatprep.subr.bf16.mxu0 %v370
    %494 = vmatpush1.bf16.msra.mxu0 %v369
    %495 = vmatprep.subr.bf16.mxu0 %v374
    %496 = vmatpush1.bf16.msra.mxu0 %v373
    %497 = vmatprep.subr.bf16.mxu0 %v378
    %498 = vmatpush1.bf16.msra.mxu0 %v377
    %499 = vmatprep.subr.bf16.mxu0 %v382
    %500 = vmatpush1.bf16.msra.mxu0 %v381
    %501 = vmatprep.subr.bf16.mxu0 %v386
    %502 = vmatpush1.bf16.msra.mxu0 %v385
    %503 = vmatprep.subr.bf16.mxu0 %v390
    %504 = vmatpush1.bf16.msra.mxu0 %v389
    %505 = vmatprep.subr.bf16.mxu0 %v394
    %506 = vmatpush1.bf16.msra.mxu0 %v393
    %507 = vmatprep.subr.bf16.mxu0 %v398
    %508 = vmatpush1.bf16.msra.mxu0 %v397
    %509 = vmatprep.subr.bf16.mxu0 %v402
    %510 = vmatpush1.bf16.msra.mxu0 %v401
    %511 = vmatprep.subr.bf16.mxu0 %v406
    %512 = vmatpush1.bf16.msra.mxu0 %v405
    %513 = vmatprep.subr.bf16.mxu0 %v410
    %514 = vmatpush1.bf16.msra.mxu0 %v409
    %515 = vmatprep.subr.bf16.mxu0 %v414
    %516 = vmatpush1.bf16.msra.mxu0 %v413
    %517 = vmatprep.subr.bf16.mxu0 %v418
    %518 = vmatpush1.bf16.msra.mxu0 %v417
    %519 = vmatprep.subr.bf16.mxu0 %v422
    %520 = vmatpush1.bf16.msra.mxu0 %v421
    %521 = vmatprep.mubr.bf16.mxu0 %v82
    %522 = vmatmul.mubr.bf16.gmra.mrb[0].mxu0 %v81
    %v523 = vpop.f32.mrb[0].mxu0
    %v524 = vadd.f32 %v152, %v523
    %v525 = vpop.f32.mrb[0].mxu0
    %v526 = vadd.f32 %v156, %v525
    %v527 = vpop.f32.mrb[0].mxu0
    %v528 = vpop.f32.mrb[0].mxu0
    %529 = vdwg.mxu0
    %530 = vmatprep.subr.bf16.mxu0 %v364
    %531 = vmatpush1.bf16.msra.mxu0 %v363
    %532 = vmatprep.subr.bf16.mxu0 %v368
    %533 = vmatpush1.bf16.msra.mxu0 %v367
    %534 = vmatprep.subr.bf16.mxu0 %v372
    %535 = vmatpush1.bf16.msra.mxu0 %v371
    %536 = vmatprep.subr.bf16.mxu0 %v376
    %537 = vmatpush1.bf16.msra.mxu0 %v375
    %538 = vmatprep.subr.bf16.mxu0 %v380
    %539 = vmatpush1.bf16.msra.mxu0 %v379
    %540 = vmatprep.subr.bf16.mxu0 %v384
    %541 = vmatpush1.bf16.msra.mxu0 %v383
    %542 = vmatprep.subr.bf16.mxu0 %v388
    %543 = vmatpush1.bf16.msra.mxu0 %v387
    %544 = vmatprep.subr.bf16.mxu0 %v392
    %545 = vmatpush1.bf16.msra.mxu0 %v391
    %546 = vmatprep.subr.bf16.mxu0 %v396
    %547 = vmatpush1.bf16.msra.mxu0 %v395
    %548 = vmatprep.subr.bf16.mxu0 %v400
    %549 = vmatpush1.bf16.msra.mxu0 %v399
    %550 = vmatprep.subr.bf16.mxu0 %v404
    %551 = vmatpush1.bf16.msra.mxu0 %v403
    %552 = vmatprep.subr.bf16.mxu0 %v408
    %553 = vmatpush1.bf16.msra.mxu0 %v407
    %554 = vmatprep.subr.bf16.mxu0 %v412
    %555 = vmatpush1.bf16.msra.mxu0 %v411
    %556 = vmatprep.subr.bf16.mxu0 %v416
    %557 = vmatpush1.bf16.msra.mxu0 %v415
    %558 = vmatprep.subr.bf16.mxu0 %v420
    %559 = vmatpush1.bf16.msra.mxu0 %v419
    %560 = vmatprep.subr.bf16.mxu0 %v424
    %561 = vmatpush1.bf16.msra.mxu0 %v423
    %562 = vmatprep.mubr.bf16.mxu0 %v82
    %563 = vmatmul.mubr.bf16.gmra.mrb[0].mxu0 %v81
    %v564 = vpop.f32.mrb[0].mxu0
    %v565 = vadd.f32 %v160, %v564
    %v566 = vpop.f32.mrb[0].mxu0
    %v567 = vadd.f32 %v164, %v566
    %v568 = vpop.f32.mrb[0].mxu0
    %v569 = vpop.f32.mrb[0].mxu0
    %570 = vdwg.mxu0
    %v571 = vmax.f32 %v524, 0.0
    %v572 = vmax.f32 %v526, 0.0
    %v573 = vmax.f32 %v565, 0.0
    %v574 = vmax.f32 %v567, 0.0
    %v575 = vpack.c.bf16 %v571, %v571
    %v576 = vpack.c.bf16 %v572, %v572
    %v577 = vpack.c.bf16 %v573, %v573
    %v578 = vpack.c.bf16 %v574, %v574
    %v579 = vld [vmem:[#allocation4] sm:$0xff]
    %v580 = vld [vmem:[#allocation4 + $0x8] sm:$0xff]
    %v581 = vld [vmem:[#allocation4 + $0x10] sm:$0xff]
    %v582 = vld [vmem:[#allocation4 + $0x18] sm:$0xff]
    %v583 = vld [vmem:[#allocation4 + $0x20] sm:$0xff]
    %v584 = vld [vmem:[#allocation4 + $0x28] sm:$0xff]
    %v585 = vld [vmem:[#allocation4 + $0x30] sm:$0xff]
    %v586 = vld [vmem:[#allocation4 + $0x38] sm:$0xff]
    %v587 = vld [vmem:[#allocation4 + $0x40] sm:$0xff]
    %v588 = vld [vmem:[#allocation4 + $0x48] sm:$0xff]
    %v589 = vld [vmem:[#allocation4 + $0x50] sm:$0xff]
    %v590 = vld [vmem:[#allocation4 + $0x58] sm:$0xff]
    %v591 = vld [vmem:[#allocation4 + $0x60] sm:$0xff]
    %v592 = vld [vmem:[#allocation4 + $0x68] sm:$0xff]
    %v593 = vld [vmem:[#allocation4 + $0x70] sm:$0xff]
    %v594 = vld [vmem:[#allocation4 + $0x78] sm:$0xff]
    %v595 = vld [vmem:[#allocation4 + $0x80] sm:$0xff]
    %v596 = vld [vmem:[#allocation4 + $0x88] sm:$0xff]
    %v597 = vld [vmem:[#allocation4 + $0x90] sm:$0xff]
    %v598 = vld [vmem:[#allocation4 + $0x98] sm:$0xff]
    %v599 = vld [vmem:[#allocation4 + $0xa0] sm:$0xff]
    %v600 = vld [vmem:[#allocation4 + $0xa8] sm:$0xff]
    %v601 = vld [vmem:[#allocation4 + $0xb0] sm:$0xff]
    %v602 = vld [vmem:[#allocation4 + $0xb8] sm:$0xff]
    %v603 = vld [vmem:[#allocation4 + $0xc0] sm:$0xff]
    %v604 = vld [vmem:[#allocation4 + $0xc8] sm:$0xff]
    %v605 = vld [vmem:[#allocation4 + $0xd0] sm:$0xff]
    %v606 = vld [vmem:[#allocation4 + $0xd8] sm:$0xff]
    %v607 = vld [vmem:[#allocation4 + $0xe0] sm:$0xff]
    %v608 = vld [vmem:[#allocation4 + $0xe8] sm:$0xff]
    %v609 = vld [vmem:[#allocation4 + $0xf0] sm:$0xff]
    %v610 = vld [vmem:[#allocation4 + $0xf8] sm:$0xff]
    %v611 = vld [vmem:[#allocation4 + $0x100] sm:$0xff]
    %v612 = vld [vmem:[#allocation4 + $0x108] sm:$0xff]
    %v613 = vld [vmem:[#allocation4 + $0x110] sm:$0xff]
    %v614 = vld [vmem:[#allocation4 + $0x118] sm:$0xff]
    %v615 = vld [vmem:[#allocation4 + $0x120] sm:$0xff]
    %v616 = vld [vmem:[#allocation4 + $0x128] sm:$0xff]
    %v617 = vld [vmem:[#allocation4 + $0x130] sm:$0xff]
    %v618 = vld [vmem:[#allocation4 + $0x138] sm:$0xff]
    %v619 = vld [vmem:[#allocation4 + $0x140] sm:$0xff]
    %v620 = vld [vmem:[#allocation4 + $0x148] sm:$0xff]
    %v621 = vld [vmem:[#allocation4 + $0x150] sm:$0xff]
    %v622 = vld [vmem:[#allocation4 + $0x158] sm:$0xff]
    %v623 = vld [vmem:[#allocation4 + $0x160] sm:$0xff]
    %v624 = vld [vmem:[#allocation4 + $0x168] sm:$0xff]
    %v625 = vld [vmem:[#allocation4 + $0x170] sm:$0xff]
    %v626 = vld [vmem:[#allocation4 + $0x178] sm:$0xff]
    %v627 = vld [vmem:[#allocation4 + $0x180] sm:$0xff]
    %v628 = vld [vmem:[#allocation4 + $0x188] sm:$0xff]
    %v629 = vld [vmem:[#allocation4 + $0x190] sm:$0xff]
    %v630 = vld [vmem:[#allocation4 + $0x198] sm:$0xff]
    %v631 = vld [vmem:[#allocation4 + $0x1a0] sm:$0xff]
    %v632 = vld [vmem:[#allocation4 + $0x1a8] sm:$0xff]
    %v633 = vld [vmem:[#allocation4 + $0x1b0] sm:$0xff]
    %v634 = vld [vmem:[#allocation4 + $0x1b8] sm:$0xff]
    %v635 = vld [vmem:[#allocation4 + $0x1c0] sm:$0xff]
    %v636 = vld [vmem:[#allocation4 + $0x1c8] sm:$0xff]
    %v637 = vld [vmem:[#allocation4 + $0x1d0] sm:$0xff]
    %v638 = vld [vmem:[#allocation4 + $0x1d8] sm:$0xff]
    %v639 = vld [vmem:[#allocation4 + $0x1e0] sm:$0xff]
    %v640 = vld [vmem:[#allocation4 + $0x1e8] sm:$0xff]
    %v641 = vld [vmem:[#allocation4 + $0x1f0] sm:$0xff]
    %v642 = vld [vmem:[#allocation4 + $0x1f8] sm:$0xff]
    %s643 = scalar_lea.vmem %s5, 1
    %v644 = vld [vmem:[%s643] ss:$8 sm:$0x3]
    %v646 = vlaneseq
    %v647 = vshrl.u32 %v646, 7
    %v648 = vsub.s32 0, %v647
    %v649 = vrot.slane %v644, %v648
    %v650 = vlaneseq
    %v651 = vshrl.u32 %v650, 7
    %v652 = vsub.s32 1, %v651
    %v653 = vrot.slane %v644, %v652
    %v720 = vunpack.c.l.b16 %v579
    %v721 = vunpack.c.h.b16 %v579
    %v722 = vunpack.c.l.b16 %v580
    %v723 = vunpack.c.h.b16 %v580
    %v724 = vunpack.c.l.b16 %v581
    %v725 = vunpack.c.h.b16 %v581
    %v726 = vunpack.c.l.b16 %v582
    %v727 = vunpack.c.h.b16 %v582
    %v728 = vunpack.c.l.b16 %v583
    %v729 = vunpack.c.h.b16 %v583
    %v730 = vunpack.c.l.b16 %v584
    %v731 = vunpack.c.h.b16 %v584
    %v732 = vunpack.c.l.b16 %v585
    %v733 = vunpack.c.h.b16 %v585
    %v734 = vunpack.c.l.b16 %v586
    %v735 = vunpack.c.h.b16 %v586
    %v736 = vunpack.c.l.b16 %v587
    %v737 = vunpack.c.h.b16 %v587
    %v738 = vunpack.c.l.b16 %v588
    %v739 = vunpack.c.h.b16 %v588
    %v740 = vunpack.c.l.b16 %v589
    %v741 = vunpack.c.h.b16 %v589
    %v742 = vunpack.c.l.b16 %v590
    %v743 = vunpack.c.h.b16 %v590
    %v744 = vunpack.c.l.b16 %v591
    %v745 = vunpack.c.h.b16 %v591
    %v746 = vunpack.c.l.b16 %v592
    %v747 = vunpack.c.h.b16 %v592
    %v748 = vunpack.c.l.b16 %v593
    %v749 = vunpack.c.h.b16 %v593
    %v750 = vunpack.c.l.b16 %v594
    %v751 = vunpack.c.h.b16 %v594
    %v752 = vunpack.c.l.b16 %v595
    %v753 = vunpack.c.h.b16 %v595
    %v754 = vunpack.c.l.b16 %v596
    %v755 = vunpack.c.h.b16 %v596
    %v756 = vunpack.c.l.b16 %v597
    %v757 = vunpack.c.h.b16 %v597
    %v758 = vunpack.c.l.b16 %v598
    %v759 = vunpack.c.h.b16 %v598
    %v760 = vunpack.c.l.b16 %v599
    %v761 = vunpack.c.h.b16 %v599
    %v762 = vunpack.c.l.b16 %v600
    %v763 = vunpack.c.h.b16 %v600
    %v764 = vunpack.c.l.b16 %v601
    %v765 = vunpack.c.h.b16 %v601
    %v766 = vunpack.c.l.b16 %v602
    %v767 = vunpack.c.h.b16 %v602
    %v768 = vunpack.c.l.b16 %v603
    %v769 = vunpack.c.h.b16 %v603
    %v770 = vunpack.c.l.b16 %v604
    %v771 = vunpack.c.h.b16 %v604
    %v772 = vunpack.c.l.b16 %v605
    %v773 = vunpack.c.h.b16 %v605
    %v774 = vunpack.c.l.b16 %v606
    %v775 = vunpack.c.h.b16 %v606
    %v776 = vunpack.c.l.b16 %v607
    %v777 = vunpack.c.h.b16 %v607
    %v778 = vunpack.c.l.b16 %v608
    %v779 = vunpack.c.h.b16 %v608
    %v780 = vunpack.c.l.b16 %v609
    %v781 = vunpack.c.h.b16 %v609
    %v782 = vunpack.c.l.b16 %v610
    %v783 = vunpack.c.h.b16 %v610
    %v784 = vunpack.c.l.b16 %v611
    %v785 = vunpack.c.h.b16 %v611
    %v786 = vunpack.c.l.b16 %v612
    %v787 = vunpack.c.h.b16 %v612
    %v788 = vunpack.c.l.b16 %v613
    %v789 = vunpack.c.h.b16 %v613
    %v790 = vunpack.c.l.b16 %v614
    %v791 = vunpack.c.h.b16 %v614
    %v792 = vunpack.c.l.b16 %v615
    %v793 = vunpack.c.h.b16 %v615
    %v794 = vunpack.c.l.b16 %v616
    %v795 = vunpack.c.h.b16 %v616
    %v796 = vunpack.c.l.b16 %v617
    %v797 = vunpack.c.h.b16 %v617
    %v798 = vunpack.c.l.b16 %v618
    %v799 = vunpack.c.h.b16 %v618
    %v800 = vunpack.c.l.b16 %v619
    %v801 = vunpack.c.h.b16 %v619
    %v802 = vunpack.c.l.b16 %v620
    %v803 = vunpack.c.h.b16 %v620
    %v804 = vunpack.c.l.b16 %v621
    %v805 = vunpack.c.h.b16 %v621
    %v806 = vunpack.c.l.b16 %v622
    %v807 = vunpack.c.h.b16 %v622
    %v808 = vunpack.c.l.b16 %v623
    %v809 = vunpack.c.h.b16 %v623
    %v810 = vunpack.c.l.b16 %v624
    %v811 = vunpack.c.h.b16 %v624
    %v812 = vunpack.c.l.b16 %v625
    %v813 = vunpack.c.h.b16 %v625
    %v814 = vunpack.c.l.b16 %v626
    %v815 = vunpack.c.h.b16 %v626
    %v816 = vunpack.c.l.b16 %v627
    %v817 = vunpack.c.h.b16 %v627
    %v818 = vunpack.c.l.b16 %v628
    %v819 = vunpack.c.h.b16 %v628
    %v820 = vunpack.c.l.b16 %v629
    %v821 = vunpack.c.h.b16 %v629
    %v822 = vunpack.c.l.b16 %v630
    %v823 = vunpack.c.h.b16 %v630
    %v824 = vunpack.c.l.b16 %v631
    %v825 = vunpack.c.h.b16 %v631
    %v826 = vunpack.c.l.b16 %v632
    %v827 = vunpack.c.h.b16 %v632
    %v828 = vunpack.c.l.b16 %v633
    %v829 = vunpack.c.h.b16 %v633
    %v830 = vunpack.c.l.b16 %v634
    %v831 = vunpack.c.h.b16 %v634
    %v832 = vunpack.c.l.b16 %v635
    %v833 = vunpack.c.h.b16 %v635
    %v834 = vunpack.c.l.b16 %v636
    %v835 = vunpack.c.h.b16 %v636
    %v836 = vunpack.c.l.b16 %v637
    %v837 = vunpack.c.h.b16 %v637
    %v838 = vunpack.c.l.b16 %v638
    %v839 = vunpack.c.h.b16 %v638
    %v840 = vunpack.c.l.b16 %v639
    %v841 = vunpack.c.h.b16 %v639
    %v842 = vunpack.c.l.b16 %v640
    %v843 = vunpack.c.h.b16 %v640
    %v844 = vunpack.c.l.b16 %v641
    %v845 = vunpack.c.h.b16 %v641
    %v846 = vunpack.c.l.b16 %v642
    %v847 = vunpack.c.h.b16 %v642
    %v848 = vpack.c.b16 %v722, %v720
    %v849 = vpack.c.b16 %v723, %v721
    %v850 = vpack.c.b16 %v726, %v724
    %v851 = vpack.c.b16 %v727, %v725
    %v852 = vpack.c.b16 %v730, %v728
    %v853 = vpack.c.b16 %v731, %v729
    %v854 = vpack.c.b16 %v734, %v732
    %v855 = vpack.c.b16 %v735, %v733
    %v856 = vpack.c.b16 %v738, %v736
    %v857 = vpack.c.b16 %v739, %v737
    %v858 = vpack.c.b16 %v742, %v740
    %v859 = vpack.c.b16 %v743, %v741
    %v860 = vpack.c.b16 %v746, %v744
    %v861 = vpack.c.b16 %v747, %v745
    %v862 = vpack.c.b16 %v750, %v748
    %v863 = vpack.c.b16 %v751, %v749
    %v864 = vpack.c.b16 %v754, %v752
    %v865 = vpack.c.b16 %v755, %v753
    %v866 = vpack.c.b16 %v758, %v756
    %v867 = vpack.c.b16 %v759, %v757
    %v868 = vpack.c.b16 %v762, %v760
    %v869 = vpack.c.b16 %v763, %v761
    %v870 = vpack.c.b16 %v766, %v764
    %v871 = vpack.c.b16 %v767, %v765
    %v872 = vpack.c.b16 %v770, %v768
    %v873 = vpack.c.b16 %v771, %v769
    %v874 = vpack.c.b16 %v774, %v772
    %v875 = vpack.c.b16 %v775, %v773
    %v876 = vpack.c.b16 %v778, %v776
    %v877 = vpack.c.b16 %v779, %v777
    %v878 = vpack.c.b16 %v782, %v780
    %v879 = vpack.c.b16 %v783, %v781
    %v880 = vpack.c.b16 %v786, %v784
    %v881 = vpack.c.b16 %v787, %v785
    %v882 = vpack.c.b16 %v790, %v788
    %v883 = vpack.c.b16 %v791, %v789
    %v884 = vpack.c.b16 %v794, %v792
    %v885 = vpack.c.b16 %v795, %v793
    %v886 = vpack.c.b16 %v798, %v796
    %v887 = vpack.c.b16 %v799, %v797
    %v888 = vpack.c.b16 %v802, %v800
    %v889 = vpack.c.b16 %v803, %v801
    %v890 = vpack.c.b16 %v806, %v804
    %v891 = vpack.c.b16 %v807, %v805
    %v892 = vpack.c.b16 %v810, %v808
    %v893 = vpack.c.b16 %v811, %v809
    %v894 = vpack.c.b16 %v814, %v812
    %v895 = vpack.c.b16 %v815, %v813
    %v896 = vpack.c.b16 %v818, %v816
    %v897 = vpack.c.b16 %v819, %v817
    %v898 = vpack.c.b16 %v822, %v820
    %v899 = vpack.c.b16 %v823, %v821
    %v900 = vpack.c.b16 %v826, %v824
    %v901 = vpack.c.b16 %v827, %v825
    %v902 = vpack.c.b16 %v830, %v828
    %v903 = vpack.c.b16 %v831, %v829
    %v904 = vpack.c.b16 %v834, %v832
    %v905 = vpack.c.b16 %v835, %v833
    %v906 = vpack.c.b16 %v838, %v836
    %v907 = vpack.c.b16 %v839, %v837
    %v908 = vpack.c.b16 %v842, %v840
    %v909 = vpack.c.b16 %v843, %v841
    %v910 = vpack.c.b16 %v846, %v844
    %v911 = vpack.c.b16 %v847, %v845
    %976 = vmatprep.subr.bf16.mxu0 %v849
    %977 = vmatpush1.bf16.msra.mxu0 %v848
    %978 = vmatprep.subr.bf16.mxu0 %v851
    %979 = vmatpush1.bf16.msra.mxu0 %v850
    %980 = vmatprep.subr.bf16.mxu0 %v853
    %981 = vmatpush1.bf16.msra.mxu0 %v852
    %982 = vmatprep.subr.bf16.mxu0 %v855
    %983 = vmatpush1.bf16.msra.mxu0 %v854
    %984 = vmatprep.subr.bf16.mxu0 %v857
    %985 = vmatpush1.bf16.msra.mxu0 %v856
    %986 = vmatprep.subr.bf16.mxu0 %v859
    %987 = vmatpush1.bf16.msra.mxu0 %v858
    %988 = vmatprep.subr.bf16.mxu0 %v861
    %989 = vmatpush1.bf16.msra.mxu0 %v860
    %990 = vmatprep.subr.bf16.mxu0 %v863
    %991 = vmatpush1.bf16.msra.mxu0 %v862
    %992 = vmatprep.subr.bf16.mxu0 %v865
    %993 = vmatpush1.bf16.msra.mxu0 %v864
    %994 = vmatprep.subr.bf16.mxu0 %v867
    %995 = vmatpush1.bf16.msra.mxu0 %v866
    %996 = vmatprep.subr.bf16.mxu0 %v869
    %997 = vmatpush1.bf16.msra.mxu0 %v868
    %998 = vmatprep.subr.bf16.mxu0 %v871
    %999 = vmatpush1.bf16.msra.mxu0 %v870
    %1000 = vmatprep.subr.bf16.mxu0 %v873
    %1001 = vmatpush1.bf16.msra.mxu0 %v872
    %1002 = vmatprep.subr.bf16.mxu0 %v875
    %1003 = vmatpush1.bf16.msra.mxu0 %v874
    %1004 = vmatprep.subr.bf16.mxu0 %v877
    %1005 = vmatpush1.bf16.msra.mxu0 %v876
    %1006 = vmatprep.subr.bf16.mxu0 %v879
    %1007 = vmatpush1.bf16.msra.mxu0 %v878
    %1008 = vmatprep.mubr.bf16.mxu0 %v576
    %1009 = vmatmul.mubr.bf16.gmra.mrb[0].mxu0 %v575
    %v1010 = vpop.f32.mrb[0].mxu0
    %v1011 = vadd.f32 %v649, %v1010
    %v1012 = vpop.f32.mrb[0].mxu0
    %v1013 = vadd.f32 %v653, %v1012
    %v1014 = vpop.f32.mrb[0].mxu0
    %v1015 = vpop.f32.mrb[0].mxu0
    %1016 = vdwg.mxu0
    %1017 = vmatprep.subr.bf16.mxu0 %v881
    %1018 = vmatpush1.bf16.msra.mxu0 %v880
    %1019 = vmatprep.subr.bf16.mxu0 %v883
    %1020 = vmatpush1.bf16.msra.mxu0 %v882
    %1021 = vmatprep.subr.bf16.mxu0 %v885
    %1022 = vmatpush1.bf16.msra.mxu0 %v884
    %1023 = vmatprep.subr.bf16.mxu0 %v887
    %1024 = vmatpush1.bf16.msra.mxu0 %v886
    %1025 = vmatprep.subr.bf16.mxu0 %v889
    %1026 = vmatpush1.bf16.msra.mxu0 %v888
    %1027 = vmatprep.subr.bf16.mxu0 %v891
    %1028 = vmatpush1.bf16.msra.mxu0 %v890
    %1029 = vmatprep.subr.bf16.mxu0 %v893
    %1030 = vmatpush1.bf16.msra.mxu0 %v892
    %1031 = vmatprep.subr.bf16.mxu0 %v895
    %1032 = vmatpush1.bf16.msra.mxu0 %v894
    %1033 = vmatprep.subr.bf16.mxu0 %v897
    %1034 = vmatpush1.bf16.msra.mxu0 %v896
    %1035 = vmatprep.subr.bf16.mxu0 %v899
    %1036 = vmatpush1.bf16.msra.mxu0 %v898
    %1037 = vmatprep.subr.bf16.mxu0 %v901
    %1038 = vmatpush1.bf16.msra.mxu0 %v900
    %1039 = vmatprep.subr.bf16.mxu0 %v903
    %1040 = vmatpush1.bf16.msra.mxu0 %v902
    %1041 = vmatprep.subr.bf16.mxu0 %v905
    %1042 = vmatpush1.bf16.msra.mxu0 %v904
    %1043 = vmatprep.subr.bf16.mxu0 %v907
    %1044 = vmatpush1.bf16.msra.mxu0 %v906
    %1045 = vmatprep.subr.bf16.mxu0 %v909
    %1046 = vmatpush1.bf16.msra.mxu0 %v908
    %1047 = vmatprep.subr.bf16.mxu0 %v911
    %1048 = vmatpush1.bf16.msra.mxu0 %v910
    %1049 = vmatprep.mubr.bf16.mxu0 %v578
    %1050 = vmatmul.mubr.bf16.gmra.mrb[0].mxu0 %v577
    %v1051 = vpop.f32.mrb[0].mxu0
    %v1052 = vadd.f32 %v1011, %v1051
    %v1053 = vpop.f32.mrb[0].mxu0
    %v1054 = vadd.f32 %v1013, %v1053
    %v1055 = vpop.f32.mrb[0].mxu0
    %v1056 = vpop.f32.mrb[0].mxu0
    %1057 = vdwg.mxu0
    %v1058 = vmax.f32 %v1052, 0.0
    %v1059 = vmax.f32 %v1054, 0.0
    %v1060 = vpack.c.bf16 %v1058, %v1058
    %v1061 = vpack.c.bf16 %v1059, %v1059
    %v1062 = vld [vmem:[#allocation6] sm:$0xf]
    %v1063 = vld [vmem:[#allocation6 + $0x4] sm:$0xf]
    %v1064 = vld [vmem:[#allocation6 + $0x8] sm:$0xf]
    %v1065 = vld [vmem:[#allocation6 + $0xc] sm:$0xf]
    %v1066 = vld [vmem:[#allocation6 + $0x10] sm:$0xf]
    %v1067 = vld [vmem:[#allocation6 + $0x14] sm:$0xf]
    %v1068 = vld [vmem:[#allocation6 + $0x18] sm:$0xf]
    %v1069 = vld [vmem:[#allocation6 + $0x1c] sm:$0xf]
    %v1070 = vld [vmem:[#allocation6 + $0x20] sm:$0xf]
    %v1071 = vld [vmem:[#allocation6 + $0x24] sm:$0xf]
    %v1072 = vld [vmem:[#allocation6 + $0x28] sm:$0xf]
    %v1073 = vld [vmem:[#allocation6 + $0x2c] sm:$0xf]
    %v1074 = vld [vmem:[#allocation6 + $0x30] sm:$0xf]
    %v1075 = vld [vmem:[#allocation6 + $0x34] sm:$0xf]
    %v1076 = vld [vmem:[#allocation6 + $0x38] sm:$0xf]
    %v1077 = vld [vmem:[#allocation6 + $0x3c] sm:$0xf]
    %v1078 = vld [vmem:[#allocation6 + $0x40] sm:$0xf]
    %v1079 = vld [vmem:[#allocation6 + $0x44] sm:$0xf]
    %v1080 = vld [vmem:[#allocation6 + $0x48] sm:$0xf]
    %v1081 = vld [vmem:[#allocation6 + $0x4c] sm:$0xf]
    %v1082 = vld [vmem:[#allocation6 + $0x50] sm:$0xf]
    %v1083 = vld [vmem:[#allocation6 + $0x54] sm:$0xf]
    %v1084 = vld [vmem:[#allocation6 + $0x58] sm:$0xf]
    %v1085 = vld [vmem:[#allocation6 + $0x5c] sm:$0xf]
    %v1086 = vld [vmem:[#allocation6 + $0x60] sm:$0xf]
    %v1087 = vld [vmem:[#allocation6 + $0x64] sm:$0xf]
    %v1088 = vld [vmem:[#allocation6 + $0x68] sm:$0xf]
    %v1089 = vld [vmem:[#allocation6 + $0x6c] sm:$0xf]
    %v1090 = vld [vmem:[#allocation6 + $0x70] sm:$0xf]
    %v1091 = vld [vmem:[#allocation6 + $0x74] sm:$0xf]
    %v1092 = vld [vmem:[#allocation6 + $0x78] sm:$0xf]
    %v1093 = vld [vmem:[#allocation6 + $0x7c] sm:$0xf]
    %v1094 = vld [vmem:[%s5 + $0x2] ss:$0 sm:$0xff]
    %v1127 = vunpack.c.l.b16 %v1062
    %v1128 = vunpack.c.l.b16 %v1063
    %v1129 = vunpack.c.l.b16 %v1064
    %v1130 = vunpack.c.l.b16 %v1065
    %v1131 = vunpack.c.l.b16 %v1066
    %v1132 = vunpack.c.l.b16 %v1067
    %v1133 = vunpack.c.l.b16 %v1068
    %v1134 = vunpack.c.l.b16 %v1069
    %v1135 = vunpack.c.l.b16 %v1070
    %v1136 = vunpack.c.l.b16 %v1071
    %v1137 = vunpack.c.l.b16 %v1072
    %v1138 = vunpack.c.l.b16 %v1073
    %v1139 = vunpack.c.l.b16 %v1074
    %v1140 = vunpack.c.l.b16 %v1075
    %v1141 = vunpack.c.l.b16 %v1076
    %v1142 = vunpack.c.l.b16 %v1077
    %v1143 = vunpack.c.l.b16 %v1078
    %v1144 = vunpack.c.l.b16 %v1079
    %v1145 = vunpack.c.l.b16 %v1080
    %v1146 = vunpack.c.l.b16 %v1081
    %v1147 = vunpack.c.l.b16 %v1082
    %v1148 = vunpack.c.l.b16 %v1083
    %v1149 = vunpack.c.l.b16 %v1084
    %v1150 = vunpack.c.l.b16 %v1085
    %v1151 = vunpack.c.l.b16 %v1086
    %v1152 = vunpack.c.l.b16 %v1087
    %v1153 = vunpack.c.l.b16 %v1088
    %v1154 = vunpack.c.l.b16 %v1089
    %v1155 = vunpack.c.l.b16 %v1090
    %v1156 = vunpack.c.l.b16 %v1091
    %v1157 = vunpack.c.l.b16 %v1092
    %v1158 = vunpack.c.l.b16 %v1093
    %v1159 = vpack.c.b16 %v1128, %v1127
    %v1160 = vpack.c.b16 %v1130, %v1129
    %v1161 = vpack.c.b16 %v1132, %v1131
    %v1162 = vpack.c.b16 %v1134, %v1133
    %v1163 = vpack.c.b16 %v1136, %v1135
    %v1164 = vpack.c.b16 %v1138, %v1137
    %v1165 = vpack.c.b16 %v1140, %v1139
    %v1166 = vpack.c.b16 %v1142, %v1141
    %v1167 = vpack.c.b16 %v1144, %v1143
    %v1168 = vpack.c.b16 %v1146, %v1145
    %v1169 = vpack.c.b16 %v1148, %v1147
    %v1170 = vpack.c.b16 %v1150, %v1149
    %v1171 = vpack.c.b16 %v1152, %v1151
    %v1172 = vpack.c.b16 %v1154, %v1153
    %v1173 = vpack.c.b16 %v1156, %v1155
    %v1174 = vpack.c.b16 %v1158, %v1157
    %1191 = vmatprep.subr.bf16.mxu0 0
    %1192 = vmatpush1.bf16.msra.mxu0 %v1159
    %1193 = vmatprep.subr.bf16.mxu0 0
    %1194 = vmatpush1.bf16.msra.mxu0 %v1160
    %1195 = vmatprep.subr.bf16.mxu0 0
    %1196 = vmatpush1.bf16.msra.mxu0 %v1161
    %1197 = vmatprep.subr.bf16.mxu0 0
    %1198 = vmatpush1.bf16.msra.mxu0 %v1162
    %1199 = vmatprep.subr.bf16.mxu0 0
    %1200 = vmatpush1.bf16.msra.mxu0 %v1163
    %1201 = vmatprep.subr.bf16.mxu0 0
    %1202 = vmatpush1.bf16.msra.mxu0 %v1164
    %1203 = vmatprep.subr.bf16.mxu0 0
    %1204 = vmatpush1.bf16.msra.mxu0 %v1165
    %1205 = vmatprep.subr.bf16.mxu0 0
    %1206 = vmatpush1.bf16.msra.mxu0 %v1166
    %1207 = vmatprep.subr.bf16.mxu0 0
    %1208 = vmatpush1.bf16.msra.mxu0 %v1167
    %1209 = vmatprep.subr.bf16.mxu0 0
    %1210 = vmatpush1.bf16.msra.mxu0 %v1168
    %1211 = vmatprep.subr.bf16.mxu0 0
    %1212 = vmatpush1.bf16.msra.mxu0 %v1169
    %1213 = vmatprep.subr.bf16.mxu0 0
    %1214 = vmatpush1.bf16.msra.mxu0 %v1170
    %1215 = vmatprep.subr.bf16.mxu0 0
    %1216 = vmatpush1.bf16.msra.mxu0 %v1171
    %1217 = vmatprep.subr.bf16.mxu0 0
    %1218 = vmatpush1.bf16.msra.mxu0 %v1172
    %1219 = vmatprep.subr.bf16.mxu0 0
    %1220 = vmatpush1.bf16.msra.mxu0 %v1173
    %1221 = vmatprep.subr.bf16.mxu0 0
    %1222 = vmatpush1.bf16.msra.mxu0 %v1174
    %1223 = vmatprep.mubr.bf16.mxu0 %v1061
    %1224 = vmatmul.mubr.bf16.gmra.mrb[0].mxu0 %v1060
    %v1225 = vpop.f32.mrb[0].mxu0
    %v1226 = vadd.f32 %v1094, %v1225
    %v1227 = vpop.f32.mrb[0].mxu0
    %v1228 = vpop.f32.mrb[0].mxu0
    %v1229 = vpop.f32.mrb[0].mxu0
    %1230 = vdwg.mxu0
    %v1231 = vmax.f32 %v1226, 0.0
    %v1232 = vpack.c.bf16 %v1231, %v1231
    %v1233 = vld [vmem:[#allocation7] sm:$0xf]
    %v1234 = vld [vmem:[#allocation7 + $0x4] sm:$0xf]
    %v1235 = vld [vmem:[#allocation7 + $0x8] sm:$0xf]
    %v1236 = vld [vmem:[#allocation7 + $0xc] sm:$0xf]
    %v1237 = vld [vmem:[#allocation7 + $0x10] sm:$0xf]
    %v1238 = vld [vmem:[#allocation7 + $0x14] sm:$0xf]
    %v1239 = vld [vmem:[#allocation7 + $0x18] sm:$0xf]
    %v1240 = vld [vmem:[#allocation7 + $0x1c] sm:$0xf]
    %v1241 = vld [vmem:[#allocation7 + $0x20] sm:$0xf]
    %v1242 = vld [vmem:[#allocation7 + $0x24] sm:$0xf]
    %v1243 = vld [vmem:[#allocation7 + $0x28] sm:$0xf]
    %v1244 = vld [vmem:[#allocation7 + $0x2c] sm:$0xf]
    %v1245 = vld [vmem:[#allocation7 + $0x30] sm:$0xf]
    %v1246 = vld [vmem:[#allocation7 + $0x34] sm:$0xf]
    %v1247 = vld [vmem:[#allocation7 + $0x38] sm:$0xf]
    %v1248 = vld [vmem:[#allocation7 + $0x3c] sm:$0xf]
    %v1249 = vld [vmem:[%s5 + $0x3] ss:$0 sm:$0xff]
    %v1266 = vunpack.c.l.b16 %v1233
    %v1267 = vunpack.c.l.b16 %v1234
    %v1268 = vunpack.c.l.b16 %v1235
    %v1269 = vunpack.c.l.b16 %v1236
    %v1270 = vunpack.c.l.b16 %v1237
    %v1271 = vunpack.c.l.b16 %v1238
    %v1272 = vunpack.c.l.b16 %v1239
    %v1273 = vunpack.c.l.b16 %v1240
    %v1274 = vunpack.c.l.b16 %v1241
    %v1275 = vunpack.c.l.b16 %v1242
    %v1276 = vunpack.c.l.b16 %v1243
    %v1277 = vunpack.c.l.b16 %v1244
    %v1278 = vunpack.c.l.b16 %v1245
    %v1279 = vunpack.c.l.b16 %v1246
    %v1280 = vunpack.c.l.b16 %v1247
    %v1281 = vunpack.c.l.b16 %v1248
    %v1282 = vpack.c.b16 %v1267, %v1266
    %v1283 = vpack.c.b16 %v1269, %v1268
    %v1284 = vpack.c.b16 %v1271, %v1270
    %v1285 = vpack.c.b16 %v1273, %v1272
    %v1286 = vpack.c.b16 %v1275, %v1274
    %v1287 = vpack.c.b16 %v1277, %v1276
    %v1288 = vpack.c.b16 %v1279, %v1278
    %v1289 = vpack.c.b16 %v1281, %v1280
    %1298 = vmatprep.subr.bf16.mxu0 0
    %1299 = vmatpush1.bf16.msra.mxu0 %v1282
    %1300 = vmatprep.subr.bf16.mxu0 0
    %1301 = vmatpush1.bf16.msra.mxu0 %v1283
    %1302 = vmatprep.subr.bf16.mxu0 0
    %1303 = vmatpush1.bf16.msra.mxu0 %v1284
    %1304 = vmatprep.subr.bf16.mxu0 0
    %1305 = vmatpush1.bf16.msra.mxu0 %v1285
    %1306 = vmatprep.subr.bf16.mxu0 0
    %1307 = vmatpush1.bf16.msra.mxu0 %v1286
    %1308 = vmatprep.subr.bf16.mxu0 0
    %1309 = vmatpush1.bf16.msra.mxu0 %v1287
    %1310 = vmatprep.subr.bf16.mxu0 0
    %1311 = vmatpush1.bf16.msra.mxu0 %v1288
    %1312 = vmatprep.subr.bf16.mxu0 0
    %1313 = vmatpush1.bf16.msra.mxu0 %v1289
    %1314 = vmatprep.subr.bf16.mxu0 0
    %1315 = vmatpush1.bf16.msra.mxu0 0
    %1316 = vmatprep.subr.bf16.mxu0 0
    %1317 = vmatpush1.bf16.msra.mxu0 0
    %1318 = vmatprep.subr.bf16.mxu0 0
    %1319 = vmatpush1.bf16.msra.mxu0 0
    %1320 = vmatprep.subr.bf16.mxu0 0
    %1321 = vmatpush1.bf16.msra.mxu0 0
    %1322 = vmatprep.subr.bf16.mxu0 0
    %1323 = vmatpush1.bf16.msra.mxu0 0
    %1324 = vmatprep.subr.bf16.mxu0 0
    %1325 = vmatpush1.bf16.msra.mxu0 0
    %1326 = vmatprep.subr.bf16.mxu0 0
    %1327 = vmatpush1.bf16.msra.mxu0 0
    %1328 = vmatprep.subr.bf16.mxu0 0
    %1329 = vmatpush1.bf16.msra.mxu0 0
    %1330 = vmatprep.mubr.bf16.mxu0 0
    %1331 = vmatmul.mubr.bf16.gmra.mrb[0].mxu0 %v1232
    %v1332 = vpop.f32.mrb[0].mxu0
    %v1333 = vadd.f32 %v1249, %v1332
    %v1334 = vpop.f32.mrb[0].mxu0
    %v1335 = vpop.f32.mrb[0].mxu0
    %v1336 = vpop.f32.mrb[0].mxu0
    %1337 = vdwg.mxu0
    %1338 = vst [vmem:[%s6] sm:$0xff] %v1333
    // Predicated region
    $region42: #{climbnet_forward.1} parent=1 // pred_check
      _
    $region43: #{climbnet_forward.1} parent=1 // pred_check_branch
      %1340 = sbr.rel (0) target = $region45
    $region44: #{climbnet_forward.1} parent=1 // pred_region
      _
    $region45: #{climbnet_forward.1} parent=1 // pred_fallthru
      _
    // Predicated region
    $region46: #{climbnet_forward.1} parent=1 // pred_check
      _
    $region47: #{climbnet_forward.1} parent=1 // pred_check_branch
      %1342 = sbr.rel (0) target = $region49
    $region48: #{climbnet_forward.1} parent=1 // pred_region
      _
    $region49: #{climbnet_forward.1} parent=1 // pred_fallthru
      _
    %1343 = vsyncpa [#allocation3], 1
    %1344 = vsyncpa [#allocation5], 1
    %1345 = vsyncpa [#allocation8], 1

</llo_original>
